<compile_context>
chip_gen: v7x
topology: tpu7x:2x2x1
jax: 0.10.0
libtpu: 0.0.40
codegen_flags: <defaults>
</compile_context>

<pallas_src>
import jax
import jax.numpy as jnp
from jax.experimental import pallas as pl
from jax.experimental.pallas import tpu as pltpu


# ----------------------------------------------------------------------------- kernel
def _accumulate_columns(out_ref, term, th, w):
    """Accumulate per-column partial sums of `term` (TH, W) f32 into the
    resident (1, 1, 8, W) output block using only elementwise VPU adds."""
    nfull = (th // 8) * 8
    if nfull > 0:
        part = jnp.sum(term[:nfull, :].reshape(nfull // 8, 8, w), axis=0)   # (8, W)
        out_ref[0, 0, :, :] += part
    rem = th - nfull
    if rem > 0:   # only reachable when H % 8 != 0 (single full-height tile fallback)
        out_ref[0, 0, 0:rem, :] += term[nfull:th, :]


def _depth_smoothness_kernel(pred_ref, tgt_ref, out_x_ref, out_y_ref):
    t = pl.program_id(2)
    f32 = jnp.float32

    p = pred_ref[0]    # (Cd, TH, W), native dtype
    im = tgt_ref[0]    # (Ci, TH, W), native dtype
    _, th, w = p.shape

    @pl.when(t == 0)
    def _init():
        out_x_ref[...] = jnp.zeros_like(out_x_ref)
        out_y_ref[...] = jnp.zeros_like(out_y_ref)

    # ---- horizontal gradient: +1 neighbour along the lane (W) axis -----------
    # rolled[..., i] == x[..., (i + 1) % W]  (XLU rotate; no misaligned slices).
    # The wrap column (W-1) is NOT masked here: the wrapper drops it.
    p_xn = pltpu.roll(p, shift=w - 1, axis=2)
    im_xn = pltpu.roll(im, shift=w - 1, axis=2)
    dpx = jnp.sum(jnp.abs(p_xn - p), axis=0)          # (TH, W) native dtype
    gix = jnp.mean(jnp.abs(im_xn - im), axis=0)       # (TH, W) native dtype
    term_x = dpx.astype(f32) * jnp.exp(-gix.astype(f32))
    _accumulate_columns(out_x_ref, term_x, th, w)

    # ---- vertical gradient: +1 neighbour along the sublane (row) axis --------
    # The wrap row (TH-1) and cross-tile row pairs are corrected in the wrapper.
    p_yn = pltpu.roll(p, shift=th - 1, axis=1)
    im_yn = pltpu.roll(im, shift=th - 1, axis=1)
    dpy = jnp.sum(jnp.abs(p_yn - p), axis=0)
    giy = jnp.mean(jnp.abs(im_yn - im), axis=0)
    term_y = dpy.astype(f32) * jnp.exp(-giy.astype(f32))
    _accumulate_columns(out_y_ref, term_y, th, w)


# ----------------------------------------------------------------------------- sizing
def _chip_budgets():
    """(combined pred+target tile budget, vmem_limit_bytes), sized per chip."""
    vmem_bytes = 64 * 1024 * 1024                      # conservative default (v7x)
    try:
        info = pltpu.get_tpu_info()
        vmem_bytes = int(getattr(info, "vmem_capacity_bytes", vmem_bytes))
    except Exception:
        pass
    if vmem_bytes >= 100 * 1024 * 1024:                # v5e / v6e (128 MiB VMEM)
        in_budget = 8 * 1024 * 1024
    else:                                              # v7x (64 MiB VMEM)
        in_budget = 4 * 1024 * 1024
    vmem_limit = min(96 * 1024 * 1024, (vmem_bytes * 3) // 4)
    return in_budget, vmem_limit


def _pick_row_tile(h, n_channels, w, itemsize, budget_bytes):
    """Largest row tile dividing H that obeys the (8,128) block rule and keeps
    one pred+target tile under `budget_bytes`."""
    if h % 8 != 0:
        return h                      # single full-height tile (block dim == array dim)
    bytes_per_row = n_channels * w * itemsize
    cands = [r for r in range(8, h + 1, 8) if h % r == 0]
    fits = [r for r in cands if r * bytes_per_row <= budget_bytes]
    return max(fits) if fits else min(cands)


# ----------------------------------------------------------------------------- wrapper
def depth_smoothness_loss(pred, target, *, row_tile=None, compute_dtype=None):
    """Pallas TPU implementation of DepthSmoothnessLoss.forward."""
    n, cd, h, w = pred.shape
    nt, ci, ht, wt = target.shape
    assert (n, h, w) == (nt, ht, wt), "pred/target batch & spatial shapes must match"

    if compute_dtype is not None:      # opt-in: halve HBM traffic (approximate)
        pred = pred.astype(compute_dtype)
        target = target.astype(compute_dtype)

    itemsize = max(jnp.dtype(pred.dtype).itemsize, jnp.dtype(target.dtype).itemsize)
    in_budget, vmem_limit = _chip_budgets()
    th = _pick_row_tile(h, cd + ci, w, itemsize, in_budget) if row_tile is None else row_tile
    assert h % th == 0 and (th == h or th % 8 == 0), f"bad row tile {th} for H={h}"

    num_tiles = h // th
    num_chunks = 2 if (num_tiles >= 2 and num_tiles % 2 == 0) else 1
    tiles_per_chunk = num_tiles // num_chunks

    partial_x, partial_y = pl.pallas_call(
        _depth_smoothness_kernel,
        out_shape=(
            jax.ShapeDtypeStruct((n, num_chunks, 8, w), jnp.float32),   # per-column |d/dx| sums
            jax.ShapeDtypeStruct((n, num_chunks, 8, w), jnp.float32),   # per-column |d/dy| sums
        ),
        grid_spec=pltpu.PrefetchScalarGridSpec(
            num_scalar_prefetch=0,
            grid=(n, num_chunks, tiles_per_chunk),
            in_specs=[
                pl.BlockSpec((1, cd, th, w),
                             lambda b, c, t: (b, 0, c * tiles_per_chunk + t, 0)),
                pl.BlockSpec((1, ci, th, w),
                             lambda b, c, t: (b, 0, c * tiles_per_chunk + t, 0)),
            ],
            out_specs=[
                pl.BlockSpec((1, 1, 8, w), lambda b, c, t: (b, c, 0, 0)),
                pl.BlockSpec((1, 1, 8, w), lambda b, c, t: (b, c, 0, 0)),
            ],
        ),
        compiler_params=pltpu.CompilerParams(
            dimension_semantics=("parallel", "parallel", "arbitrary"),
            vmem_limit_bytes=vmem_limit,
        ),
    )(pred, target)

    f32 = jnp.float32
    # x: drop the wrap column (W-1); everything else in the partial is valid.
    sum_x = jnp.sum(partial_x[..., : w - 1])
    # y: unmasked kernel sum, then tiny wrapper-side boundary bookkeeping that
    # touches only the first/last rows of each row tile.
    sum_y = jnp.sum(partial_y)

    pr = pred.reshape(n, cd, num_tiles, th, w)
    tg = target.reshape(n, ci, num_tiles, th, w)
    p_first, p_last = pr[:, :, :, 0, :], pr[:, :, :, th - 1, :]       # (n, cd, T, w)
    t_first, t_last = tg[:, :, :, 0, :], tg[:, :, :, th - 1, :]       # (n, ci, T, w)

    # remove each tile's in-tile wrap artefact (pairs row 0 with row TH-1)
    wrap_dp = jnp.sum(jnp.abs(p_first - p_last), axis=1).astype(f32)
    wrap_gi = jnp.mean(jnp.abs(t_first - t_last), axis=1).astype(f32)
    sum_y = sum_y - jnp.sum(wrap_dp * jnp.exp(-wrap_gi))

    # add the true row pairs that straddle tile boundaries
    if num_tiles > 1:
        bnd_dp = jnp.sum(jnp.abs(p_last[:, :, :-1] - p_first[:, :, 1:]), axis=1).astype(f32)
        bnd_gi = jnp.mean(jnp.abs(t_last[:, :, :-1] - t_first[:, :, 1:]), axis=1).astype(f32)
        sum_y = sum_y + jnp.sum(bnd_dp * jnp.exp(-bnd_gi))

    # exact divisors of the reference means (independent of the tiling)
    cnt_x = n * cd * h * (w - 1)
    cnt_y = n * cd * (h - 1) * w
    return sum_x / cnt_x + sum_y / cnt_y


# ----------------------------------------------------------------------------- reference
def _reference(pred, target):
    """Pure-JAX reference mirroring the PyTorch module."""
    gdx = jnp.abs(pred[:, :, :, :-1] - pred[:, :, :, 1:])
    gdy = jnp.abs(pred[:, :, :-1, :] - pred[:, :, 1:, :])
    gix = jnp.mean(jnp.abs(target[:, :, :, :-1] - target[:, :, :, 1:]), axis=1, keepdims=True)
    giy = jnp.mean(jnp.abs(target[:, :, :-1, :] - target[:, :, 1:, :]), axis=1, keepdims=True)
    gdx = gdx * jnp.exp(-gix)
    gdy = gdy * jnp.exp(-giy)
    return jnp.mean(gdx) + jnp.mean(gdy)


if __name__ == "__main__":
    key = jax.random.PRNGKey(0)
    k1, k2, k3, k4 = jax.random.split(key, 4)

    # pred: disparity (N=2, Cd=1, H=16, W=128); target: RGB image (N=2, Ci=3, H=16, W=128)
    pred = jax.random.uniform(k1, (2, 1, 16, 128), dtype=jnp.float32)
    target = jax.random.uniform(k2, (2, 3, 16, 128), dtype=jnp.float32)
    ref = _reference(pred, target)

    # default auto-picked tile (single full-height tile at this small size)
    loss_auto = depth_smoothness_loss(pred, target)
    jax.block_until_ready(loss_auto)
    assert jnp.allclose(loss_auto, ref, rtol=1e-5, atol=1e-6), (loss_auto, ref)

    # forced small tiles: 2 row tiles -> 2 H-chunks, exercises the per-chunk
    # accumulators and the wrapper-side tile-boundary correction
    loss_tiled = depth_smoothness_loss(pred, target, row_tile=8)
    jax.block_until_ready(loss_tiled)
    assert jnp.allclose(loss_tiled, ref, rtol=1e-5, atol=1e-6), (loss_tiled, ref)

    # taller image: 4 row tiles -> 2 chunks x 2 tiles per chunk
    pred2 = jax.random.uniform(k3, (2, 1, 32, 128), dtype=jnp.float32)
    target2 = jax.random.uniform(k4, (2, 3, 32, 128), dtype=jnp.float32)
    ref2 = _reference(pred2, target2)
    loss2 = depth_smoothness_loss(pred2, target2, row_tile=8)
    jax.block_until_ready(loss2)
    assert jnp.allclose(loss2, ref2, rtol=1e-5, atol=1e-6), (loss2, ref2)

    # opt-in bf16 compute path (halves HBM traffic; approximate numerics)
    loss_bf16 = depth_smoothness_loss(pred, target, compute_dtype=jnp.bfloat16)
    jax.block_until_ready(loss_bf16)
    assert jnp.allclose(loss_bf16, ref, rtol=5e-2, atol=1e-3), (loss_bf16, ref)

    print("KERNEL_OK")
</pallas_src>

<mosaic_0001>
module attributes {stable_mosaic.version = 11 : i64} {
  func.func @_depth_smoothness_kernel(%arg0: i32, %arg1: i32, %arg2: i32, %arg3: memref<1x1x16x128xf32, #tpu.memory_space<vmem>>, %arg4: memref<1x3x16x128xf32, #tpu.memory_space<vmem>>, %arg5: memref<1x1x8x128xf32, #tpu.memory_space<vmem>>, %arg6: memref<1x1x8x128xf32, #tpu.memory_space<vmem>>) attributes {dimension_semantics = [#tpu.dimension_semantics<parallel>, #tpu.dimension_semantics<parallel>, #tpu.dimension_semantics<arbitrary>], iteration_bounds = array<i64: 2, 1, 1>, scalar_prefetch = 0 : i64, scratch_operands = 0 : i64, tpu.core_type = #tpu.core_type<tc>, window_params = [{transform_indices = @transform_0, window_bounds = array<i64: 1, 1, 16, 128>}, {transform_indices = @transform_1, window_bounds = array<i64: 1, 3, 16, 128>}, {transform_indices = @transform_2, window_bounds = array<i64: 1, 1, 8, 128>}, {transform_indices = @transform_3, window_bounds = array<i64: 1, 1, 8, 128>}]} {
    %c0 = arith.constant 0 : index
    %c0_0 = arith.constant 0 : index
    %c0_1 = arith.constant 0 : index
    %c0_2 = arith.constant 0 : index
    %0 = vector.load %arg3[%c0, %c0_0, %c0_1, %c0_2] : memref<1x1x16x128xf32, #tpu.memory_space<vmem>>, vector<1x1x16x128xf32>
    %1 = vector.shape_cast %0 : vector<1x1x16x128xf32> to vector<1x16x128xf32>
    %c0_3 = arith.constant 0 : index
    %c0_4 = arith.constant 0 : index
    %c0_5 = arith.constant 0 : index
    %c0_6 = arith.constant 0 : index
    %2 = vector.load %arg4[%c0_3, %c0_4, %c0_5, %c0_6] : memref<1x3x16x128xf32, #tpu.memory_space<vmem>>, vector<1x3x16x128xf32>
    %3 = vector.shape_cast %2 : vector<1x3x16x128xf32> to vector<3x16x128xf32>
    %c0_i32 = arith.constant 0 : i32
    %4 = arith.cmpi eq, %arg2, %c0_i32 : i32
    %5 = arith.extui %4 : i1 to i32
    %c0_i32_7 = arith.constant 0 : i32
    %6 = arith.cmpi ne, %5, %c0_i32_7 : i32
    scf.if %6 {
      %cst_35 = arith.constant 0.000000e+00 : f32
      %51 = vector.broadcast %cst_35 : f32 to vector<1x1x8x128xf32>
      %c0_36 = arith.constant 0 : index
      %c0_37 = arith.constant 0 : index
      %c0_38 = arith.constant 0 : index
      %c0_39 = arith.constant 0 : index
      %52 = vector.load %arg5[%c0_36, %c0_37, %c0_38, %c0_39] : memref<1x1x8x128xf32, #tpu.memory_space<vmem>>, vector<1x1x8x128xf32>
      tpu.vector_store %arg5[%c0_36, %c0_37, %c0_38, %c0_39], %51 {strides = array<i32>} : memref<1x1x8x128xf32, #tpu.memory_space<vmem>>, vector<1x1x8x128xf32>,
      %cst_40 = arith.constant 0.000000e+00 : f32
      %53 = vector.broadcast %cst_40 : f32 to vector<1x1x8x128xf32>
      %c0_41 = arith.constant 0 : index
      %c0_42 = arith.constant 0 : index
      %c0_43 = arith.constant 0 : index
      %c0_44 = arith.constant 0 : index
      %54 = vector.load %arg6[%c0_41, %c0_42, %c0_43, %c0_44] : memref<1x1x8x128xf32, #tpu.memory_space<vmem>>, vector<1x1x8x128xf32>
      tpu.vector_store %arg6[%c0_41, %c0_42, %c0_43, %c0_44], %53 {strides = array<i32>} : memref<1x1x8x128xf32, #tpu.memory_space<vmem>>, vector<1x1x8x128xf32>,
    } else {
    }
    %c127_i32 = arith.constant 127 : i32
    %7 = tpu.dynamic_rotate %1 by %c127_i32 dim 2 : vector<1x16x128xf32>, i32 -> vector<1x16x128xf32>
    %c127_i32_8 = arith.constant 127 : i32
    %8 = tpu.dynamic_rotate %3 by %c127_i32_8 dim 2 : vector<3x16x128xf32>, i32 -> vector<3x16x128xf32>
    %9 = arith.subf %7, %1 : vector<1x16x128xf32>
    %10 = math.absf %9 : vector<1x16x128xf32>
    %cst = arith.constant dense<0.000000e+00> : vector<16x128xf32>
    %11 = vector.multi_reduction <add>, %10, %cst [0] : vector<1x16x128xf32> to vector<16x128xf32>
    %12 = arith.subf %8, %3 : vector<3x16x128xf32>
    %13 = math.absf %12 : vector<3x16x128xf32>
    %cst_9 = arith.constant dense<0.000000e+00> : vector<16x128xf32>
    %14 = vector.multi_reduction <add>, %13, %cst_9 [0] : vector<3x16x128xf32> to vector<16x128xf32>
    %cst_10 = arith.constant 3.000000e+00 : f32
    %15 = vector.broadcast %cst_10 : f32 to vector<16x128xf32>
    %16 = arith.divf %14, %15 : vector<16x128xf32>
    %cst_11 = arith.constant 0.000000e+00 : f32
    %17 = vector.broadcast %cst_11 : f32 to vector<16x128xf32>
    %18 = arith.subf %17, %16 : vector<16x128xf32>
    %19 = math.exp %18 : vector<16x128xf32>
    %20 = arith.mulf %11, %19 : vector<16x128xf32>
    %21 = vector.shape_cast %20 : vector<16x128xf32> to vector<2x8x128xf32>
    %cst_12 = arith.constant dense<0.000000e+00> : vector<8x128xf32>
    %22 = vector.multi_reduction <add>, %21, %cst_12 [0] : vector<2x8x128xf32> to vector<8x128xf32>
    %c0_13 = arith.constant 0 : index
    %c0_14 = arith.constant 0 : index
    %c0_15 = arith.constant 0 : index
    %c0_16 = arith.constant 0 : index
    %23 = vector.load %arg5[%c0_13, %c0_14, %c0_15, %c0_16] : memref<1x1x8x128xf32, #tpu.memory_space<vmem>>, vector<1x1x8x128xf32>
    %24 = vector.shape_cast %23 : vector<1x1x8x128xf32> to vector<8x128xf32>
    %25 = arith.addf %24, %22 : vector<8x128xf32>
    %c0_17 = arith.constant 0 : index
    %c0_18 = arith.constant 0 : index
    %c0_19 = arith.constant 0 : index
    %c0_20 = arith.constant 0 : index
    %26 = vector.load %arg5[%c0_17, %c0_18, %c0_19, %c0_20] : memref<1x1x8x128xf32, #tpu.memory_space<vmem>>, vector<1x1x8x128xf32>
    %27 = vector.shape_cast %26 : vector<1x1x8x128xf32> to vector<8x128xf32>
    %28 = vector.shape_cast %25 : vector<8x128xf32> to vector<1x1x8x128xf32>
    tpu.vector_store %arg5[%c0_17, %c0_18, %c0_19, %c0_20], %28 {strides = array<i32>} : memref<1x1x8x128xf32, #tpu.memory_space<vmem>>, vector<1x1x8x128xf32>,
    %c15_i32 = arith.constant 15 : i32
    %29 = tpu.dynamic_rotate %1 by %c15_i32 dim 1 : vector<1x16x128xf32>, i32 -> vector<1x16x128xf32>
    %c15_i32_21 = arith.constant 15 : i32
    %30 = tpu.dynamic_rotate %3 by %c15_i32_21 dim 1 : vector<3x16x128xf32>, i32 -> vector<3x16x128xf32>
    %31 = arith.subf %29, %1 : vector<1x16x128xf32>
    %32 = math.absf %31 : vector<1x16x128xf32>
    %cst_22 = arith.constant dense<0.000000e+00> : vector<16x128xf32>
    %33 = vector.multi_reduction <add>, %32, %cst_22 [0] : vector<1x16x128xf32> to vector<16x128xf32>
    %34 = arith.subf %30, %3 : vector<3x16x128xf32>
    %35 = math.absf %34 : vector<3x16x128xf32>
    %cst_23 = arith.constant dense<0.000000e+00> : vector<16x128xf32>
    %36 = vector.multi_reduction <add>, %35, %cst_23 [0] : vector<3x16x128xf32> to vector<16x128xf32>
    %cst_24 = arith.constant 3.000000e+00 : f32
    %37 = vector.broadcast %cst_24 : f32 to vector<16x128xf32>
    %38 = arith.divf %36, %37 : vector<16x128xf32>
    %cst_25 = arith.constant 0.000000e+00 : f32
    %39 = vector.broadcast %cst_25 : f32 to vector<16x128xf32>
    %40 = arith.subf %39, %38 : vector<16x128xf32>
    %41 = math.exp %40 : vector<16x128xf32>
    %42 = arith.mulf %33, %41 : vector<16x128xf32>
    %43 = vector.shape_cast %42 : vector<16x128xf32> to vector<2x8x128xf32>
    %cst_26 = arith.constant dense<0.000000e+00> : vector<8x128xf32>
    %44 = vector.multi_reduction <add>, %43, %cst_26 [0] : vector<2x8x128xf32> to vector<8x128xf32>
    %c0_27 = arith.constant 0 : index
    %c0_28 = arith.constant 0 : index
    %c0_29 = arith.constant 0 : index
    %c0_30 = arith.constant 0 : index
    %45 = vector.load %arg6[%c0_27, %c0_28, %c0_29, %c0_30] : memref<1x1x8x128xf32, #tpu.memory_space<vmem>>, vector<1x1x8x128xf32>
    %46 = vector.shape_cast %45 : vector<1x1x8x128xf32> to vector<8x128xf32>
    %47 = arith.addf %46, %44 : vector<8x128xf32>
    %c0_31 = arith.constant 0 : index
    %c0_32 = arith.constant 0 : index
    %c0_33 = arith.constant 0 : index
    %c0_34 = arith.constant 0 : index
    %48 = vector.load %arg6[%c0_31, %c0_32, %c0_33, %c0_34] : memref<1x1x8x128xf32, #tpu.memory_space<vmem>>, vector<1x1x8x128xf32>
    %49 = vector.shape_cast %48 : vector<1x1x8x128xf32> to vector<8x128xf32>
    %50 = vector.shape_cast %47 : vector<8x128xf32> to vector<1x1x8x128xf32>
    tpu.vector_store %arg6[%c0_31, %c0_32, %c0_33, %c0_34], %50 {strides = array<i32>} : memref<1x1x8x128xf32, #tpu.memory_space<vmem>>, vector<1x1x8x128xf32>,
    return
  }
  func.func @transform_0(%arg0: i32, %arg1: i32, %arg2: i32) -> (i32, i32, i32, i32) {
    %c1_i32 = arith.constant 1 : i32
    %0 = arith.muli %arg1, %c1_i32 : i32
    %1 = arith.addi %0, %arg2 : i32
    %c0_i32 = arith.constant 0 : i32
    %c0_i32_0 = arith.constant 0 : i32
    %c0_i32_1 = arith.constant 0 : i32
    return %arg0, %c0_i32, %1, %c0_i32_0 : i32, i32, i32, i32
  }
  func.func @transform_1(%arg0: i32, %arg1: i32, %arg2: i32) -> (i32, i32, i32, i32) {
    %c1_i32 = arith.constant 1 : i32
    %0 = arith.muli %arg1, %c1_i32 : i32
    %1 = arith.addi %0, %arg2 : i32
    %c0_i32 = arith.constant 0 : i32
    %c0_i32_0 = arith.constant 0 : i32
    %c0_i32_1 = arith.constant 0 : i32
    return %arg0, %c0_i32, %1, %c0_i32_0 : i32, i32, i32, i32
  }
  func.func @transform_2(%arg0: i32, %arg1: i32, %arg2: i32) -> (i32, i32, i32, i32) {
    %c0_i32 = arith.constant 0 : i32
    %c0_i32_0 = arith.constant 0 : i32
    %c0_i32_1 = arith.constant 0 : i32
    return %arg0, %arg1, %c0_i32, %c0_i32_0 : i32, i32, i32, i32
  }
  func.func @transform_3(%arg0: i32, %arg1: i32, %arg2: i32) -> (i32, i32, i32, i32) {
    %c0_i32 = arith.constant 0 : i32
    %c0_i32_0 = arith.constant 0 : i32
    %c0_i32_1 = arith.constant 0 : i32
    return %arg0, %arg1, %c0_i32, %c0_i32_0 : i32, i32, i32, i32
  }
}

</mosaic_0001>

<llo_original>
// kernel: tpu_custom_call.1
$region0: #{tpu_custom_call.1}
  #allocation0 [shape = 'u32[]', space=smem, size = 0x4, offset = 0x4, fixed_abs, tag = 'smem constant byte address 0x4 - core index']
  #allocation1 [shape = 'u32[144,128]{1,0:T(1,128)}', space=vmem, size = 0x12000, scoped, tag = 'internal scratch']
  %s0 = inlined_call_operand.hbm [shape: f32[2,1,16,128], index: 0, kind: input, shape index: {}]
  %s1 = inlined_call_operand.hbm [shape: f32[2,3,16,128], index: 1, kind: input, shape index: {}]
  %s2 = inlined_call_operand.hbm [shape: f32[2,1,8,128], index: 2, kind: output, shape index: {0}]
  %s3 = inlined_call_operand.hbm [shape: f32[2,1,8,128], index: 3, kind: output, shape index: {1}]
  %4 = xla_tuple %s2, %s3
  %s5 = sld [smem:[#allocation0]]
  $region61: #{tpu_custom_call.1} parent=0
    _
  %s7 = ssub.s32 1, %s5
  %s8 = scalar_select 0, %s7, %s5
  $region1: #{tpu_custom_call.1} parent=0
    #allocation2 [shape = 'u8[16384]{0}', space=vmem, size = 0x4000, scoped, tag = 'input window, operand 0']
    #allocation3 [shape = 's32[2]{0}', space=sflag, size = 0x8, scoped, tag = 'scoped memory for tpu_custom_call.1']
    #allocation4 [shape = 's32[2]{0}', space=sflag, size = 0x8, scoped, tag = 'scoped memory for tpu_custom_call.1']
    #allocation5 [shape = 'u8[49152]{0}', space=vmem, size = 0xc000, scoped, tag = 'input window, operand 1']
    #allocation6 [shape = 's32[2]{0}', space=sflag, size = 0x8, scoped, tag = 'scoped memory for tpu_custom_call.1']
    #allocation7 [shape = 'u8[8192]{0}', space=vmem, size = 0x2000, scoped, tag = 'output window, operand 0']
    #allocation8 [shape = 'u8[8192]{0}', space=vmem, size = 0x2000, scoped, tag = 'output window, operand 1']
    #allocation9 [shape = 's32[2]{0}', space=sflag, size = 0x8, scoped, tag = 'scoped memory for tpu_custom_call.1']
    %9 = vsyncpa [#allocation3], 0
    %s10 = scalar_lea.sflag [#allocation3], 1
    %11 = vsyncpa %s10, 0
    %12 = vsyncpa [#allocation6], 0
    %s13 = scalar_lea.sflag [#allocation6], 1
    %14 = vsyncpa %s13, 0
    %15 = vsyncpa [#allocation4], 0
    %s16 = scalar_lea.sflag [#allocation4], 1
    %17 = vsyncpa %s16, 0
    %18 = vsyncpa [#allocation9], 0
    %s19 = scalar_lea.sflag [#allocation9], 1
    %20 = vsyncpa %s19, 0
    loop: start=0, step=1, limit=4
    $region2: #{tpu_custom_call.1} parent=1 // loop_pre_header
      _
    $region3: #{tpu_custom_call.1} parent=1 // loop_header
      %s22 = sphi 0, %s26
      %p23 = scmp.ge.s32.totalorder %s22, 4
      %s29 = sphi 0, %s48
      %s30 = sphi 0, %s44
      %s31 = sphi 0, %s40
      %s32 = sphi 0, %s29
      %s33 = sphi 0, %s30
      %s34 = sphi 0, %s31
      %s35 = sphi 0, %s32
      %s36 = sphi 0, %s33
      %s37 = sphi 0, %s34
      %s55 = sphi 0, %s57
      %s58 = sphi 0, %s55
      %s59 = sphi 0, %s58
      %s75 = sphi 0, %s59
      %s85 = sphi 0, %s87
      %s88 = sphi 0, %s85
      %s89 = sphi 0, %s88
      %s105 = sphi 0, %s89
      %s113 = sphi 0, %s115
      %s116 = sphi 0, %s113
      %s117 = sphi 0, %s116
      %s133 = sphi 0, %s117
      %s141 = sphi 0, %s143
      %s144 = sphi 0, %s141
      %s145 = sphi 0, %s144
      %s161 = sphi 0, %s145
    $region4: #{tpu_custom_call.1} parent=1 // loop_header_branch
      %25 = sbr.rel (%p23) target = $region8
    $region5: #{tpu_custom_call.1} parent=1 // loop_body
      %s27 = ssub.s32 %s22, 1
      %s28 = ssub.s32 %s22, 2
      %s38 = sadd.s32 1, %s31
      %p39 = scmp.ge.s32.totalorder %s38, 1
      %s40 = scalar_select %p39, 0, %s38
      %s41 = sadd.s32 1, %s30
      %s42 = scalar_select %p39, %s41, %s30
      %p43 = scmp.ge.s32.totalorder %s42, 1
      %s44 = scalar_select %p43, 0, %s42
      %s45 = sadd.s32 1, %s29
      %s46 = scalar_select %p43, %s45, %s29
      %p47 = scmp.ge.s32.totalorder %s46, 2
      %s48 = scalar_select %p47, 0, %s46
      %s49 = sadd.s32 %s30, %s31
      %s50 = sadd.s32 %s44, %s40
      %s51 = ssub.s32 %s29, %s48
      %s52 = ssub.s32 %s49, %s50
      %s53 = sor.u32 %s51, %s52
      %p54 = scmp.eq.s32.totalorder %s53, 0
      %s56 = sadd.s32 %s55, 1
      %s57 = scalar_select %p54, %s55, %s56
      %p60 = pneg %p54
      %p61 = scmp.eq.s32.totalorder %s22, 1
      %p62 = por %p60, %p61
      %p63 = scmp.ne.s32.totalorder %s55, %s58
      %p64 = scmp.eq.s32.totalorder %s22, 0
      %p65 = por %p63, %p64
      %p66 = scmp.ne.s32.totalorder %s55, %s58
      %p67 = scmp.eq.s32.totalorder %s27, 1
      %p68 = por %p66, %p67
      %p69 = scmp.ne.s32.totalorder %s58, %s59
      %p70 = scmp.eq.s32.totalorder %s27, 0
      %p71 = por %p69, %p70
      %p72 = scmp.ne.s32.totalorder %s58, %s59
      %p73 = scmp.eq.s32.totalorder %s28, 1
      %p74 = por %p72, %p73
      %p76 = scmp.ne.s32.totalorder %s59, %s75
      %p77 = scmp.eq.s32.totalorder %s28, 0
      %p78 = por %p76, %p77
      %s79 = sadd.s32 %s30, %s31
      %s80 = sadd.s32 %s44, %s40
      %s81 = ssub.s32 %s29, %s48
      %s82 = ssub.s32 %s79, %s80
      %s83 = sor.u32 %s81, %s82
      %p84 = scmp.eq.s32.totalorder %s83, 0
      %s86 = sadd.s32 %s85, 1
      %s87 = scalar_select %p84, %s85, %s86
      %p90 = pneg %p84
      %p91 = scmp.eq.s32.totalorder %s22, 1
      %p92 = por %p90, %p91
      %p93 = scmp.ne.s32.totalorder %s85, %s88
      %p94 = scmp.eq.s32.totalorder %s22, 0
      %p95 = por %p93, %p94
      %p96 = scmp.ne.s32.totalorder %s85, %s88
      %p97 = scmp.eq.s32.totalorder %s27, 1
      %p98 = por %p96, %p97
      %p99 = scmp.ne.s32.totalorder %s88, %s89
      %p100 = scmp.eq.s32.totalorder %s27, 0
      %p101 = por %p99, %p100
      %p102 = scmp.ne.s32.totalorder %s88, %s89
      %p103 = scmp.eq.s32.totalorder %s28, 1
      %p104 = por %p102, %p103
      %p106 = scmp.ne.s32.totalorder %s89, %s105
      %p107 = scmp.eq.s32.totalorder %s28, 0
      %p108 = por %p106, %p107
      %s109 = ssub.s32 %s29, %s48
      %s110 = ssub.s32 %s30, %s44
      %s111 = sor.u32 %s109, %s110
      %p112 = scmp.eq.s32.totalorder %s111, 0
      %s114 = sadd.s32 %s113, 1
      %s115 = scalar_select %p112, %s113, %s114
      %p118 = pneg %p112
      %p119 = scmp.eq.s32.totalorder %s22, 1
      %p120 = por %p118, %p119
      %p121 = scmp.ne.s32.totalorder %s113, %s116
      %p122 = scmp.eq.s32.totalorder %s22, 0
      %p123 = por %p121, %p122
      %p124 = scmp.ne.s32.totalorder %s113, %s116
      %p125 = scmp.eq.s32.totalorder %s27, 1
      %p126 = por %p124, %p125
      %p127 = scmp.ne.s32.totalorder %s116, %s117
      %p128 = scmp.eq.s32.totalorder %s27, 0
      %p129 = por %p127, %p128
      %p130 = scmp.ne.s32.totalorder %s116, %s117
      %p131 = scmp.eq.s32.totalorder %s28, 1
      %p132 = por %p130, %p131
      %p134 = scmp.ne.s32.totalorder %s117, %s133
      %p135 = scmp.eq.s32.totalorder %s28, 0
      %p136 = por %p134, %p135
      %s137 = ssub.s32 %s29, %s48
      %s138 = ssub.s32 %s30, %s44
      %s139 = sor.u32 %s137, %s138
      %p140 = scmp.eq.s32.totalorder %s139, 0
      %s142 = sadd.s32 %s141, 1
      %s143 = scalar_select %p140, %s141, %s142
      %p146 = pneg %p140
      %p147 = scmp.eq.s32.totalorder %s22, 1
      %p148 = por %p146, %p147
      %p149 = scmp.ne.s32.totalorder %s141, %s144
      %p150 = scmp.eq.s32.totalorder %s22, 0
      %p151 = por %p149, %p150
      %p152 = scmp.ne.s32.totalorder %s141, %s144
      %p153 = scmp.eq.s32.totalorder %s27, 1
      %p154 = por %p152, %p153
      %p155 = scmp.ne.s32.totalorder %s144, %s145
      %p156 = scmp.eq.s32.totalorder %s27, 0
      %p157 = por %p155, %p156
      %p158 = scmp.ne.s32.totalorder %s144, %s145
      %p159 = scmp.eq.s32.totalorder %s28, 1
      %p160 = por %p158, %p159
      %p162 = scmp.ne.s32.totalorder %s145, %s161
      %p163 = scmp.eq.s32.totalorder %s28, 0
      %p164 = por %p162, %p163
      %p165 = scmp.le.s32.totalorder 1, %s22
      %p166 = scmp.lt.s32.totalorder %s22, 3
      %p167 = pnand %p165, %p166
      %p168 = pneg %p167
      // Predicated region
      $region9: #{tpu_custom_call.1} parent=5 // pred_check
        _
      $region10: #{tpu_custom_call.1} parent=5 // pred_check_branch
        %170 = sbr.rel (%p167) target = $region12
      $region11: #{tpu_custom_call.1} parent=5 // pred_region
        %s171 = ssub.s32 %s22, 1
      $region12: #{tpu_custom_call.1} parent=5 // pred_fallthru
        _
      %p172 = scmp.lt.s32.totalorder %s22, 2
      // Predicated region
      $region13: #{tpu_custom_call.1} parent=5 // pred_check
        %p173 = pneg %p172
      $region14: #{tpu_custom_call.1} parent=5 // pred_check_branch
        %175 = sbr.rel (%p173) target = $region16
      $region15: #{tpu_custom_call.1} parent=5 // pred_region
        // Predicated region
        $region17: #{tpu_custom_call.1} parent=15 // pred_check
          %p176 = pneg %p65
        $region18: #{tpu_custom_call.1} parent=15 // pred_check_branch
          %178 = sbr.rel (%p176) target = $region20
        $region19: #{tpu_custom_call.1} parent=15 // pred_region
          %s179 = sand.u32 %s55, 1
          %s180 = scalar_lea.sflag [#allocation3], %s179
          %s181 = sand.u32 %s55, 1
          %s182 = smul.addr %s181, 16
          %s183 = scalar_lea.vmem [#allocation2], %s182
          %s184 = sadd.s32 %s30, %s31
          %s185 = smul.u32 2, %s184
          %s187 = ssub.s32 256, 256
          %188 = vsyncadd %s180, %s187
          %s189 = smul.addr %s29, 2
          %s190 = sadd.s32 %s185, %s189
          %s191 = smul.addr %s190, 128
          %s192 = scalar_lea.hbm %s0, %s191
          %s193 = sshll.u32 %s183, 4
          %s194 = int_to_ptr.vmem [resolvable:$true] %s193
          %199 = dma.hbm_to_vmem [thread:$0]  %s192, 256, %s194, %s180, 128, 128, 8
        $region20: #{tpu_custom_call.1} parent=15 // pred_fallthru
          _
        // Predicated region
        $region21: #{tpu_custom_call.1} parent=15 // pred_check
          %p200 = pneg %p95
        $region22: #{tpu_custom_call.1} parent=15 // pred_check_branch
          %202 = sbr.rel (%p200) target = $region24
        $region23: #{tpu_custom_call.1} parent=15 // pred_region
          %s203 = sand.u32 %s85, 1
          %s204 = scalar_lea.sflag [#allocation6], %s203
          %s205 = sand.u32 %s85, 1
          %s206 = smul.addr %s205, 48
          %s207 = scalar_lea.vmem [#allocation5], %s206
          %s208 = sadd.s32 %s30, %s31
          %s209 = smul.u32 2, %s208
          %s211 = ssub.s32 768, 768
          %212 = vsyncadd %s204, %s211
          %s213 = smul.addr %s29, 6
          %s214 = sadd.s32 %s209, %s213
          %s215 = smul.addr %s214, 128
          %s216 = scalar_lea.hbm %s1, %s215
          %s217 = sshll.u32 %s207, 4
          %s218 = int_to_ptr.vmem [resolvable:$true] %s217
          %223 = dma.hbm_to_vmem [thread:$0]  %s216, 768, %s218, %s204, 128, 128, 8
        $region24: #{tpu_custom_call.1} parent=15 // pred_fallthru
          _
      $region16: #{tpu_custom_call.1} parent=5 // pred_fallthru
        _
      %p224 = scmp.le.s32.totalorder 1, %s22
      %p225 = scmp.lt.s32.totalorder %s22, 3
      %p226 = pnand %p224, %p225
      %p227 = pneg %p226
      // Predicated region
      $region25: #{tpu_custom_call.1} parent=5 // pred_check
        _
      $region26: #{tpu_custom_call.1} parent=5 // pred_check_branch
        %229 = sbr.rel (%p226) target = $region28
      $region27: #{tpu_custom_call.1} parent=5 // pred_region
        %s230 = ssub.s32 %s22, 1
        %s231 = sand.u32 %s58, 1
        %s232 = scalar_lea.sflag [#allocation3], %s231
        %s233 = sand.u32 %s58, 1
        %s234 = smul.addr %s233, 16
        %s235 = scalar_lea.vmem [#allocation2], %s234
        // Predicated region
        $region29: #{tpu_custom_call.1} parent=27 // pred_check
          %p236 = pneg %p71
        $region30: #{tpu_custom_call.1} parent=27 // pred_check_branch
          %238 = sbr.rel (%p236) target = $region32
        $region31: #{tpu_custom_call.1} parent=27 // pred_region
          %239 = dma.done %s232, 256
        $region32: #{tpu_custom_call.1} parent=27 // pred_fallthru
          _
        %s240 = sand.u32 %s88, 1
        %s241 = scalar_lea.sflag [#allocation6], %s240
        %s242 = sand.u32 %s88, 1
        %s243 = smul.addr %s242, 48
        %s244 = scalar_lea.vmem [#allocation5], %s243
        // Predicated region
        $region33: #{tpu_custom_call.1} parent=27 // pred_check
          %p245 = pneg %p101
        $region34: #{tpu_custom_call.1} parent=27 // pred_check_branch
          %247 = sbr.rel (%p245) target = $region36
        $region35: #{tpu_custom_call.1} parent=27 // pred_region
          %248 = dma.done %s241, 768
        $region36: #{tpu_custom_call.1} parent=27 // pred_fallthru
          _
        %s249 = sand.u32 %s58, 1
        %s250 = scalar_lea.sflag [#allocation3], %s249
        %s251 = sand.u32 %s58, 1
        %s252 = smul.addr %s251, 16
        %s253 = scalar_lea.vmem [#allocation2], %s252
        %p254 = pneg %p71
        %p255 = pneg %p68
        %s256 = sand.u32 %s88, 1
        %s257 = scalar_lea.sflag [#allocation6], %s256
        %s258 = sand.u32 %s88, 1
        %s259 = smul.addr %s258, 48
        %s260 = scalar_lea.vmem [#allocation5], %s259
        %p261 = pneg %p101
        %p262 = pneg %p98
        %p263 = pneg %p129
        %p264 = pneg %p126
        %s265 = sand.u32 %s116, 1
        %s266 = scalar_lea.sflag [#allocation4], %s265
        %s267 = sand.u32 %s116, 1
        %s268 = smul.addr %s267, 8
        %s269 = scalar_lea.vmem [#allocation7], %s268
        %p270 = pneg %p157
        %p271 = pneg %p154
        %s272 = sand.u32 %s144, 1
        %s273 = scalar_lea.sflag [#allocation9], %s272
        %s274 = sand.u32 %s144, 1
        %s275 = smul.addr %s274, 8
        %s276 = scalar_lea.vmem [#allocation8], %s275
        %s277 = sadd.s32 %s33, %s34
        %s278 = smul.u32 2, %s277
        %s279 = sadd.s32 %s33, %s34
        %s280 = smul.u32 2, %s279
        %v281 = vld [vmem:[%s235] sm:$0xff]
        %v282 = vld [vmem:[%s235 + $0x8] sm:$0xff]
        %v283 = vld [vmem:[%s244] sm:$0xff]
        %v284 = vld [vmem:[%s244 + $0x8] sm:$0xff]
        %v285 = vld [vmem:[%s244 + $0x10] sm:$0xff]
        %v286 = vld [vmem:[%s244 + $0x18] sm:$0xff]
        %v287 = vld [vmem:[%s244 + $0x20] sm:$0xff]
        %v288 = vld [vmem:[%s244 + $0x28] sm:$0xff]
        %p289 = scmp.eq.s32.totalorder %s34, 0
        // Predicated region
        $region37: #{tpu_custom_call.1} parent=27 // pred_check
          %p290 = pneg %p289
        $region38: #{tpu_custom_call.1} parent=27 // pred_check_branch
          %292 = sbr.rel (%p290) target = $region40
        $region39: #{tpu_custom_call.1} parent=27 // pred_region
          %293 = vst [vmem:[%s269] sm:$0xff] 0.0
          %294 = vst [vmem:[%s276] sm:$0xff] 0.0
        $region40: #{tpu_custom_call.1} parent=27 // pred_fallthru
          _
        %295 = vrot.lane.b32.xlu0 %v281, 127
        %v296 = vpop.permute.xlu0 %295
        %297 = vrot.lane.b32.xlu0 %v282, 127
        %v298 = vpop.permute.xlu0 %297
        %299 = vrot.lane.b32.xlu0 %v283, 127
        %v300 = vpop.permute.xlu0 %299
        %301 = vrot.lane.b32.xlu0 %v284, 127
        %v302 = vpop.permute.xlu0 %301
        %303 = vrot.lane.b32.xlu0 %v285, 127
        %v304 = vpop.permute.xlu0 %303
        %305 = vrot.lane.b32.xlu0 %v286, 127
        %v306 = vpop.permute.xlu0 %305
        %307 = vrot.lane.b32.xlu0 %v287, 127
        %v308 = vpop.permute.xlu0 %307
        %309 = vrot.lane.b32.xlu0 %v288, 127
        %v310 = vpop.permute.xlu0 %309
        %v311 = vsub.f32 %v296, %v281
        %v312 = vsub.f32 %v298, %v282
        %v313 = vand.u32 2147483647, %v311
        %v314 = vand.u32 2147483647, %v312
        %v315 = vadd.f32 %v313, 0.0
        %v316 = vadd.f32 %v314, 0.0
        %v317 = vsub.f32 %v300, %v283
        %v318 = vsub.f32 %v302, %v284
        %v319 = vsub.f32 %v304, %v285
        %v320 = vsub.f32 %v306, %v286
        %v321 = vsub.f32 %v308, %v287
        %v322 = vsub.f32 %v310, %v288
        %v323 = vand.u32 2147483647, %v317
        %v324 = vand.u32 2147483647, %v318
        %v325 = vand.u32 2147483647, %v319
        %v326 = vand.u32 2147483647, %v320
        %v327 = vand.u32 2147483647, %v321
        %v328 = vand.u32 2147483647, %v322
        %v329 = vadd.f32 %v323, %v325
        %v330 = vadd.f32 %v329, %v327
        %v331 = vadd.f32 %v324, %v326
        %v332 = vadd.f32 %v331, %v328
        %v333 = vrcp.pop 3.0
        %v334 = vmul.f32 %v330, %v333
        %v335 = vmul.f32 %v332, %v333
        %v336 = vsub.f32 0.0, %v334
        %v337 = vsub.f32 0.0, %v335
        %v338 = vmul.f32 %v336, 1.442695
        %v339 = vpow.pop %v338
        %v340 = vmul.f32 %v337, 1.442695
        %v341 = vpow.pop %v340
        %v342 = vmul.f32 %v315, %v339
        %v343 = vmul.f32 %v316, %v341
        %v344 = vadd.f32 %v342, %v343
        %v345 = vld [vmem:[%s269] sm:$0xff]
        %v346 = vadd.f32 %v345, %v344
        %347 = vst [vmem:[%s269] sm:$0xff] %v346
        %v348 = vrot.slane %v281, 1
        %v349 = vrot.slane %v282, 1
        %v350 = vlaneseq
        %v351 = vshrl.u32 %v350, 7
        %vm352 = vcmp.lt.s32.totalorder %v351, 7
        %v353 = vsel %vm352, %v348, %v349
        %v354 = vsel %vm352, %v349, %v348
        %v355 = vrot.slane %v283, 1
        %v356 = vrot.slane %v285, 1
        %v357 = vrot.slane %v287, 1
        %v358 = vrot.slane %v284, 1
        %v359 = vrot.slane %v286, 1
        %v360 = vrot.slane %v288, 1
        %v361 = vsel %vm352, %v355, %v358
        %v362 = vsel %vm352, %v356, %v359
        %v363 = vsel %vm352, %v357, %v360
        %v364 = vsel %vm352, %v358, %v355
        %v365 = vsel %vm352, %v359, %v356
        %v366 = vsel %vm352, %v360, %v357
        %v367 = vsub.f32 %v353, %v281
        %v368 = vsub.f32 %v354, %v282
        %v369 = vand.u32 2147483647, %v367
        %v370 = vand.u32 2147483647, %v368
        %v371 = vadd.f32 %v369, 0.0
        %v372 = vadd.f32 %v370, 0.0
        %v373 = vsub.f32 %v361, %v283
        %v374 = vsub.f32 %v364, %v284
        %v375 = vsub.f32 %v362, %v285
        %v376 = vsub.f32 %v365, %v286
        %v377 = vsub.f32 %v363, %v287
        %v378 = vsub.f32 %v366, %v288
        %v379 = vand.u32 2147483647, %v373
        %v380 = vand.u32 2147483647, %v374
        %v381 = vand.u32 2147483647, %v375
        %v382 = vand.u32 2147483647, %v376
        %v383 = vand.u32 2147483647, %v377
        %v384 = vand.u32 2147483647, %v378
        %v385 = vadd.f32 %v379, %v381
        %v386 = vadd.f32 %v385, %v383
        %v387 = vadd.f32 %v380, %v382
        %v388 = vadd.f32 %v387, %v384
        %v389 = vmul.f32 %v386, %v333
        %v390 = vmul.f32 %v388, %v333
        %v391 = vsub.f32 0.0, %v389
        %v392 = vsub.f32 0.0, %v390
        %v393 = vmul.f32 %v391, 1.442695
        %v394 = vpow.pop %v393
        %v395 = vmul.f32 %v392, 1.442695
        %v396 = vpow.pop %v395
        %v397 = vmul.f32 %v371, %v394
        %v398 = vmul.f32 %v372, %v396
        %v399 = vadd.f32 %v397, %v398
        %v400 = vld [vmem:[%s276] sm:$0xff]
        %v401 = vadd.f32 %v400, %v399
        %402 = vst [vmem:[%s276] sm:$0xff] %v401
        %s403 = sand.u32 %s116, 1
        %s404 = scalar_lea.sflag [#allocation4], %s403
        %s405 = sand.u32 %s116, 1
        %s406 = smul.addr %s405, 8
        %s407 = scalar_lea.vmem [#allocation7], %s406
        %s408 = sand.u32 %s144, 1
        %s409 = scalar_lea.sflag [#allocation9], %s408
        %s410 = sand.u32 %s144, 1
        %s411 = smul.addr %s410, 8
        %s412 = scalar_lea.vmem [#allocation8], %s411
        // Predicated region
        $region41: #{tpu_custom_call.1} parent=27 // pred_check
          %p413 = pneg %p126
        $region42: #{tpu_custom_call.1} parent=27 // pred_check_branch
          %415 = sbr.rel (%p413) target = $region44
        $region43: #{tpu_custom_call.1} parent=27 // pred_region
          %s417 = ssub.s32 128, 128
          %418 = vsyncadd %s404, %s417
          %s419 = sadd.s32 %s33, %s32
          %s420 = smul.addr %s419, 128
          %s421 = scalar_lea.hbm %s2, %s420
          %s423 = sshll.u32 %s407, 4
          %s424 = int_to_ptr.vmem [resolvable:$true] %s423
          %426 = dma.vmem_to_hbm [thread:$0]  %s424, 128, %s421, %s404
        $region44: #{tpu_custom_call.1} parent=27 // pred_fallthru
          _
        // Predicated region
        $region45: #{tpu_custom_call.1} parent=27 // pred_check
          %p427 = pneg %p154
        $region46: #{tpu_custom_call.1} parent=27 // pred_check_branch
          %429 = sbr.rel (%p427) target = $region48
        $region47: #{tpu_custom_call.1} parent=27 // pred_region
          %s431 = ssub.s32 128, 128
          %432 = vsyncadd %s409, %s431
          %s433 = sadd.s32 %s33, %s32
          %s434 = smul.addr %s433, 128
          %s435 = scalar_lea.hbm %s3, %s434
          %s437 = sshll.u32 %s412, 4
          %s438 = int_to_ptr.vmem [resolvable:$true] %s437
          %440 = dma.vmem_to_hbm [thread:$0]  %s438, 128, %s435, %s409
        $region48: #{tpu_custom_call.1} parent=27 // pred_fallthru
          _
      $region28: #{tpu_custom_call.1} parent=5 // pred_fallthru
        _
      %p441 = scmp.le.s32.totalorder 2, %s22
      // Predicated region
      $region49: #{tpu_custom_call.1} parent=5 // pred_check
        %p442 = pneg %p441
      $region50: #{tpu_custom_call.1} parent=5 // pred_check_branch
        %444 = sbr.rel (%p442) target = $region52
      $region51: #{tpu_custom_call.1} parent=5 // pred_region
        %s445 = ssub.s32 %s22, 2
        // Predicated region
        $region53: #{tpu_custom_call.1} parent=51 // pred_check
          %p446 = pneg %p132
        $region54: #{tpu_custom_call.1} parent=51 // pred_check_branch
          %448 = sbr.rel (%p446) target = $region56
        $region55: #{tpu_custom_call.1} parent=51 // pred_region
          %s449 = sand.u32 %s117, 1
          %s450 = scalar_lea.sflag [#allocation4], %s449
          %s451 = sand.u32 %s117, 1
          %s452 = smul.addr %s451, 8
          %s453 = scalar_lea.vmem [#allocation7], %s452
          %454 = dma.done %s450, 128
        $region56: #{tpu_custom_call.1} parent=51 // pred_fallthru
          _
        // Predicated region
        $region57: #{tpu_custom_call.1} parent=51 // pred_check
          %p455 = pneg %p160
        $region58: #{tpu_custom_call.1} parent=51 // pred_check_branch
          %457 = sbr.rel (%p455) target = $region60
        $region59: #{tpu_custom_call.1} parent=51 // pred_region
          %s458 = sand.u32 %s145, 1
          %s459 = scalar_lea.sflag [#allocation9], %s458
          %s460 = sand.u32 %s145, 1
          %s461 = smul.addr %s460, 8
          %s462 = scalar_lea.vmem [#allocation8], %s461
          %463 = dma.done %s459, 128
        $region60: #{tpu_custom_call.1} parent=51 // pred_fallthru
          _
      $region52: #{tpu_custom_call.1} parent=5 // pred_fallthru
        _
    $region6: #{tpu_custom_call.1} parent=1 // loop_footer
      %s26 = sadd.s32 1, %s22
    $region7: #{tpu_custom_call.1} parent=1 // loop_footer_branch
      %21 = sbr.rel target = $region3
    $region8: #{tpu_custom_call.1} parent=1 // loop_exit
      _
    %464 = vsyncpa [#allocation3], 1
    %s465 = scalar_lea.sflag [#allocation3], 1
    %466 = vsyncpa %s465, 1
    %467 = vsyncpa [#allocation6], 1
    %s468 = scalar_lea.sflag [#allocation6], 1
    %469 = vsyncpa %s468, 1
    %470 = vsyncpa [#allocation4], 1
    %s471 = scalar_lea.sflag [#allocation4], 1
    %472 = vsyncpa %s471, 1
    %473 = vsyncpa [#allocation9], 1
    %s474 = scalar_lea.sflag [#allocation9], 1
    %475 = vsyncpa %s474, 1

</llo_original>
